<compile_context>
chip_gen: v5e
topology: v5e:2x2
jax: 0.10.0
libtpu: 0.0.40
codegen_flags: <defaults>
</compile_context>

<pallas_src>
import math

import numpy as np
import jax
import jax.numpy as jnp
from jax.experimental import pallas as pl
from jax.experimental.pallas import tpu as pltpu


def _harmonic_kernel(x_ref, w_ref, out_ref):
    # x_ref:   (TN, D+1)     VMEM tile; last column is the constant 1 that
    #                        carries the +pi/2 phase for the cos half.
    # w_ref:   (D+1, 2*D*H)  VMEM, whole array (grid-invariant, one DMA).
    # out_ref: (TN, 2*D*H)   VMEM tile.
    #
    # theta[:, :D*H] = omega0*2**j * x[:, k]          (sin arguments)
    # theta[:, D*H:] = omega0*2**j * x[:, k] + pi/2   (cos arguments)
    # so sin(theta) is the full [sin | cos] slab already in its final lane
    # layout: one aligned full-tile store, no cross-lane rotates.
    theta = jnp.dot(
        x_ref[...], w_ref[...],
        preferred_element_type=jnp.float32,
        precision=jax.lax.Precision.HIGHEST,   # keep f32 phase accuracy; free at K=4
    )
    out_ref[...] = jnp.sin(theta).astype(out_ref.dtype)


def harmonic_embedding(x, n_harmonic_functions=60, omega0=0.1, *,
                       row_tile=2048, out_dtype=jnp.float32):
    """x: [..., D] float  ->  [..., 2 * n_harmonic_functions * D] (out_dtype)."""
    x = jnp.asarray(x, jnp.float32)
    *batch, d = x.shape
    h = n_harmonic_functions
    dh = d * h
    two_dh = 2 * dh

    # Frequencies (same as the registered buffer in the torch module).
    # NOTE: for H=60, omega0*2**59 ~ 5.8e16; f32 sin/cos at such arguments
    # carry no signal (matches the PyTorch reference behavior).
    freqs = omega0 * (2.0 ** jnp.arange(h, dtype=jnp.float32))            # [H]

    # Block-diagonal expansion: W[k, k*H + j] = freqs[j]  (D, D*H), duplicated
    # for the cos half, plus a bias row [0]*DH + [pi/2]*DH driven by an
    # augmented ones-column on x.
    eye_d = jnp.eye(d, dtype=jnp.float32)
    w_sin = (eye_d[:, :, None] * freqs[None, None, :]).reshape(d, dh)     # (D, DH)
    w2 = jnp.concatenate([w_sin, w_sin], axis=1)                          # (D, 2DH)
    bias = jnp.concatenate(
        [jnp.zeros((1, dh), jnp.float32),
         jnp.full((1, dh), jnp.float32(np.pi / 2))], axis=1)              # (1, 2DH)
    w_aug = jnp.concatenate([w2, bias], axis=0)                           # (D+1, 2DH)

    n = math.prod(batch) if batch else 1
    x_flat = x.reshape(n, d)
    x_aug = jnp.concatenate([x_flat, jnp.ones((n, 1), jnp.float32)], axis=1)  # (N, D+1)

    # Biggest useful tile, clamped to N rounded up to a sublane multiple
    # (keeps the (8, 128) rule satisfied for tiny inputs).
    tile = min(row_tile, ((n + 7) // 8) * 8)
    grid = (pl.cdiv(n, tile),)   # ragged final block handled by Pallas masking

    out_itemsize = jnp.dtype(out_dtype).itemsize
    cost = pl.CostEstimate(
        flops=2 * n * (d + 1) * two_dh,
        transcendentals=n * two_dh,
        bytes_accessed=n * (d + 1) * 4 + n * two_dh * out_itemsize
                       + (d + 1) * two_dh * 4,
    )

    out_flat = pl.pallas_call(
        _harmonic_kernel,
        out_shape=jax.ShapeDtypeStruct((n, two_dh), out_dtype),
        grid_spec=pltpu.PrefetchScalarGridSpec(
            num_scalar_prefetch=0,
            grid=grid,
            in_specs=[
                pl.BlockSpec((tile, d + 1), lambda i: (i, 0)),
                # Grid-invariant tiny W: whole array resident in VMEM, one DMA.
                pl.BlockSpec(memory_space=pltpu.MemorySpace.VMEM),
            ],
            out_specs=pl.BlockSpec((tile, two_dh), lambda i: (i, 0)),
        ),
        compiler_params=pltpu.CompilerParams(
            # "parallel" shards the row grid across both TensorCores on v7x
            # (no-op on single-TC v5e/v6e).
            dimension_semantics=("parallel",),
            # ~10 MiB actual footprint at tile=2048; raise the scoped limit so
            # larger tiles (v6e) still pipeline, while staying under v7x's
            # 64 MiB physical VMEM.
            vmem_limit_bytes=64 * 1024 * 1024,
        ),
        cost_estimate=cost,
    )(x_aug, w_aug)

    return out_flat.reshape(*batch, two_dh)


def _reference(x, n_harmonic_functions=60, omega0=0.1):
    """Literal JAX transcription of the PyTorch forward."""
    freqs = omega0 * (2.0 ** jnp.arange(n_harmonic_functions, dtype=jnp.float32))
    embed = (x[..., None] * freqs).reshape(*x.shape[:-1], -1)
    return jnp.concatenate([jnp.sin(embed), jnp.cos(embed)], axis=-1)


def _check(out, ref, *, d, h, atol=5e-4, tight=True):
    dh = d * h
    cols = np.arange(2 * dh)
    j_of_col = (cols % dh) % h
    # Harmonics with numerically meaningful arguments: compare against the f32
    # reference. Higher harmonics saturate f32 range reduction in BOTH
    # implementations (arguments up to ~6e16, pure rounding noise either way),
    # so only sanity bounds are asserted there.
    low = np.nonzero(j_of_col < 12)[0]
    assert jnp.allclose(out[..., low], ref[..., low], atol=atol, rtol=0.0), \
        "low-harmonic mismatch vs reference"
    if tight:
        very_low = np.nonzero(j_of_col < 4)[0]
        assert jnp.allclose(out[..., very_low], ref[..., very_low],
                            atol=1e-5, rtol=0.0), "tight low-harmonic mismatch"
    assert bool(jnp.all(jnp.isfinite(out))), "non-finite output"
    assert bool(jnp.all(jnp.abs(out) <= 1.0 + 1e-3)), "output outside [-1, 1]"


if __name__ == "__main__":
    H, OMEGA0 = 60, 0.1
    key = jax.random.PRNGKey(0)

    # Small shape consistent with the module: batch=2, seq=8 points, dim=3.
    x = jax.random.normal(key, (2, 8, 3), dtype=jnp.float32)
    out = jax.block_until_ready(harmonic_embedding(x, H, OMEGA0))
    ref = _reference(x, H, OMEGA0)
    assert out.shape == (2, 8, 360), out.shape
    _check(out, ref, d=3, h=H)

    # Ragged-grid check: N=200 rows with 64-row tiles (last block masked),
    # exercising the no-pad / no-slice path.
    x2 = jax.random.normal(jax.random.PRNGKey(1), (2, 100, 3), dtype=jnp.float32)
    out2 = jax.block_until_ready(harmonic_embedding(x2, H, OMEGA0, row_tile=64))
    ref2 = _reference(x2, H, OMEGA0)
    assert out2.shape == (2, 100, 360), out2.shape
    _check(out2, ref2, d=3, h=H)

    # bf16 output path (halves the dominant HBM write traffic on v5e/v6e;
    # compute stays f32, cast only at the store).
    out_bf = jax.block_until_ready(
        harmonic_embedding(x, H, OMEGA0, out_dtype=jnp.bfloat16))
    assert out_bf.shape == (2, 8, 360) and out_bf.dtype == jnp.bfloat16
    _check(out_bf.astype(jnp.float32), ref, d=3, h=H, atol=6e-3, tight=False)

    print("KERNEL_OK")
</pallas_src>

<mosaic_0001>
module attributes {stable_mosaic.version = 11 : i64} {
  func.func @_harmonic_kernel(%arg0: i32, %arg1: memref<16x4xf32, #tpu.memory_space<vmem>>, %arg2: memref<4x360xf32, #tpu.memory_space<vmem>>, %arg3: memref<16x360xf32, #tpu.memory_space<vmem>>) attributes {dimension_semantics = [#tpu.dimension_semantics<parallel>], iteration_bounds = array<i64: 1>, scalar_prefetch = 0 : i64, scratch_operands = 0 : i64, tpu.core_type = #tpu.core_type<tc>, window_params = [{transform_indices = @transform_0, window_bounds = array<i64: 16, 4>}, {pipeline_mode = #tpu.pipeline_mode<synchronous>, transform_indices = @transform_1, window_bounds = array<i64: 4, 360>}, {transform_indices = @transform_2, window_bounds = array<i64: 16, 360>}]} {
    %c0 = arith.constant 0 : index
    %c0_0 = arith.constant 0 : index
    %0 = vector.load %arg1[%c0, %c0_0] : memref<16x4xf32, #tpu.memory_space<vmem>>, vector<16x4xf32>
    %c0_1 = arith.constant 0 : index
    %c0_2 = arith.constant 0 : index
    %1 = vector.load %arg2[%c0_1, %c0_2] : memref<4x360xf32, #tpu.memory_space<vmem>>, vector<4x360xf32>
    %cst = arith.constant dense<0.000000e+00> : vector<16x360xf32>
    %2 = tpu.matmul %0, %1, %cst {dimension_numbers = #tpu.dot_dimension_numbers<[1], [0], [0], [1], [0, 0, 1, 1], [], []>, precision = #tpu.contract_precision<fp32>} : vector<16x4xf32>, vector<4x360xf32>, vector<16x360xf32> -> vector<16x360xf32>
    %3 = math.sin %2 : vector<16x360xf32>
    %c0_3 = arith.constant 0 : index
    %c0_4 = arith.constant 0 : index
    %4 = vector.load %arg3[%c0_3, %c0_4] : memref<16x360xf32, #tpu.memory_space<vmem>>, vector<16x360xf32>
    tpu.vector_store %arg3[%c0_3, %c0_4], %3 {strides = array<i32>} : memref<16x360xf32, #tpu.memory_space<vmem>>, vector<16x360xf32>,
    return
  }
  func.func @transform_0(%arg0: i32) -> (i32, i32) {
    %c0_i32 = arith.constant 0 : i32
    %c0_i32_0 = arith.constant 0 : i32
    return %arg0, %c0_i32 : i32, i32
  }
  func.func @transform_1(%arg0: i32) -> (i32, i32) {
    %c0_i32 = arith.constant 0 : i32
    %c0_i32_0 = arith.constant 0 : i32
    %c0_i32_1 = arith.constant 0 : i32
    return %c0_i32, %c0_i32_0 : i32, i32
  }
  func.func @transform_2(%arg0: i32) -> (i32, i32) {
    %c0_i32 = arith.constant 0 : i32
    %c0_i32_0 = arith.constant 0 : i32
    return %arg0, %c0_i32 : i32, i32
  }
}

</mosaic_0001>

<llo_original>
// kernel: tpu_custom_call.1
$region0: #{tpu_custom_call.1}
  #allocation0 [shape = 'u32[]', space=smem, size = 0x4, offset = 0x4, fixed_abs, tag = 'smem constant byte address 0x4 - core index']
  #allocation1 [shape = 'u32[72,128]{1,0:T(1,128)}', space=vmem, size = 0x9000, scoped, tag = 'internal scratch']
  %s0 = inlined_call_operand.vmem [shape: f32[16,4], index: 0, kind: input, shape index: {}]
  %s1 = inlined_call_operand.vmem [shape: f32[4,360], index: 1, kind: input, shape index: {}]
  %s2 = inlined_call_operand.hbm [shape: f32[16,360], index: 2, kind: output, shape index: {}]
  %s3 = sld [smem:[#allocation0]]
  $region18: #{tpu_custom_call.1} parent=0
    _
  %s5 = ssub.s32 1, %s3
  %s6 = scalar_select 0, %s5, %s3
  $region1: #{tpu_custom_call.1} parent=0
    #allocation2 [shape = 'u8[24576]{0}', space=vmem, size = 0x6000, scoped, tag = 'output window, operand 0, single buffered']
    #allocation3 [shape = 's32[1]{0}', space=sflag, size = 0x4, scoped, tag = 'scoped memory for tpu_custom_call.1']
    %7 = vsyncpa [#allocation3], 0
    // Predicated region
    $region2: #{tpu_custom_call.1} parent=1 // pred_check
      _
    $region3: #{tpu_custom_call.1} parent=1 // pred_check_branch
      %9 = sbr.rel (0) target = $region5
    $region4: #{tpu_custom_call.1} parent=1 // pred_region
      _
    $region5: #{tpu_custom_call.1} parent=1 // pred_fallthru
      _
    // Predicated region
    $region6: #{tpu_custom_call.1} parent=1 // pred_check
      _
    $region7: #{tpu_custom_call.1} parent=1 // pred_check_branch
      %11 = sbr.rel (0) target = $region9
    $region8: #{tpu_custom_call.1} parent=1 // pred_region
      _
    $region9: #{tpu_custom_call.1} parent=1 // pred_fallthru
      _
    %v12 = vld [vmem:[%s0] sm:$0xff]
    %v13 = vld [vmem:[%s0 + $0x8] sm:$0xff]
    %v14 = vld [vmem:[%s1] sm:$0xff]
    %v15 = vld [vmem:[%s1 + $0x8] sm:$0xf]
    %18 = vst [vmem:[#allocation1] ss:$2 sm:$0xff] %v14
    %s19 = scalar_lea.vmem [#allocation1], 16
    %20 = vst [vmem:[%s19] ss:$2 sm:$0xff] %v15
    %v21 = vld.sshfl [vmem:[#allocation1] sm:$0xff pattern:$0x75316420]
    %v22 = vld.sshfl [vmem:[#allocation1 + $0x8] sm:$0xff pattern:$0x75316420]
    %v23 = vld.sshfl [vmem:[#allocation1 + $0x10] sm:$0xff pattern:$0x75316420]
    %vm24 = vcmask 31744
    %v26 = vsel %vm24, %v12, 0
    %v29 = vsel %vm24, %v13, 0
    %vm31 = vcmask 1043456
    %v32 = vsel %vm31, %v21, 0
    %v34 = vsel %vm31, %v22, 0
    %v36 = vsel %vm31, %v23, 0
    %38 = vmatpush.msra.mxu0 0.0
    %39 = vmatpush.msra.mxu0 0.0
    %40 = vmatpush.msra.mxu0 0.0
    %41 = vmatpush.msra.mxu0 0.0
    %42 = vmatpush.msra.mxu0 0.0
    %43 = vmatpush.msra.mxu0 0.0
    %44 = vmatpush.msra.mxu0 0.0
    %45 = vmatpush.msra.mxu0 0.0
    %46 = vmatpush.msra.mxu0 0.0
    %47 = vmatpush.msra.mxu0 0.0
    %48 = vmatpush.msra.mxu0 0.0
    %49 = vmatpush.msra.mxu0 0.0
    %50 = vmatpush.msra.mxu0 0.0
    %51 = vmatpush.msra.mxu0 0.0
    %52 = vmatpush.msra.mxu0 0.0
    %v53 = vand.u32 %v32, 4294901760
    %54 = vmatpush.msra.mxu0 %v53
    %v55 = vand.u32 %v26, 4294901760
    %v56 = vsub.f32 %v26, %v55
    %v57 = vand.u32 %v56, 4294901760
    %v58 = vsub.f32 %v56, %v57
    %v59 = vand.u32 %v58, 4294901760
    %60 = vmatmul.f32.gmra.mxu0 %v59
    %v61 = vpop.f32.mrf.mxu0
    %v62 = vadd.f32 0.0, %v61
    %v63 = vand.u32 %v29, 4294901760
    %v64 = vsub.f32 %v29, %v63
    %v65 = vand.u32 %v64, 4294901760
    %v66 = vsub.f32 %v64, %v65
    %v67 = vand.u32 %v66, 4294901760
    %68 = vmatmul.f32.gmra.mxu0 %v67
    %v69 = vpop.f32.mrf.mxu0
    %v70 = vadd.f32 0.0, %v69
    %71 = vdwg.mxu0
    %72 = vmatpush.msra.mxu0 0.0
    %73 = vmatpush.msra.mxu0 0.0
    %74 = vmatpush.msra.mxu0 0.0
    %75 = vmatpush.msra.mxu0 0.0
    %76 = vmatpush.msra.mxu0 0.0
    %77 = vmatpush.msra.mxu0 0.0
    %78 = vmatpush.msra.mxu0 0.0
    %79 = vmatpush.msra.mxu0 0.0
    %80 = vmatpush.msra.mxu0 0.0
    %81 = vmatpush.msra.mxu0 0.0
    %82 = vmatpush.msra.mxu0 0.0
    %83 = vmatpush.msra.mxu0 0.0
    %84 = vmatpush.msra.mxu0 0.0
    %85 = vmatpush.msra.mxu0 0.0
    %86 = vmatpush.msra.mxu0 0.0
    %v87 = vand.u32 %v32, 4294901760
    %v88 = vsub.f32 %v32, %v87
    %v89 = vand.u32 %v88, 4294901760
    %v90 = vsub.f32 %v88, %v89
    %v91 = vand.u32 %v90, 4294901760
    %92 = vmatpush.msra.mxu0 %v91
    %v93 = vand.u32 %v26, 4294901760
    %94 = vmatmul.f32.gmra.mxu0 %v93
    %v95 = vpop.f32.mrf.mxu0
    %v96 = vadd.f32 %v62, %v95
    %v97 = vand.u32 %v29, 4294901760
    %98 = vmatmul.f32.gmra.mxu0 %v97
    %v99 = vpop.f32.mrf.mxu0
    %v100 = vadd.f32 %v70, %v99
    %101 = vdwg.mxu0
    %102 = vmatpush.msra.mxu0 0.0
    %103 = vmatpush.msra.mxu0 0.0
    %104 = vmatpush.msra.mxu0 0.0
    %105 = vmatpush.msra.mxu0 0.0
    %106 = vmatpush.msra.mxu0 0.0
    %107 = vmatpush.msra.mxu0 0.0
    %108 = vmatpush.msra.mxu0 0.0
    %109 = vmatpush.msra.mxu0 0.0
    %110 = vmatpush.msra.mxu0 0.0
    %111 = vmatpush.msra.mxu0 0.0
    %112 = vmatpush.msra.mxu0 0.0
    %113 = vmatpush.msra.mxu0 0.0
    %114 = vmatpush.msra.mxu0 0.0
    %115 = vmatpush.msra.mxu0 0.0
    %116 = vmatpush.msra.mxu0 0.0
    %v117 = vand.u32 %v32, 4294901760
    %v118 = vsub.f32 %v32, %v117
    %119 = vmatpush.msra.mxu0 %v118
    %v120 = vand.u32 %v26, 4294901760
    %v121 = vsub.f32 %v26, %v120
    %122 = vmatmul.f32.gmra.mxu0 %v121
    %v123 = vpop.f32.mrf.mxu0
    %v124 = vadd.f32 %v96, %v123
    %v125 = vand.u32 %v29, 4294901760
    %v126 = vsub.f32 %v29, %v125
    %127 = vmatmul.f32.gmra.mxu0 %v126
    %v128 = vpop.f32.mrf.mxu0
    %v129 = vadd.f32 %v100, %v128
    %130 = vdwg.mxu0
    %131 = vmatpush.msra.mxu0 0.0
    %132 = vmatpush.msra.mxu0 0.0
    %133 = vmatpush.msra.mxu0 0.0
    %134 = vmatpush.msra.mxu0 0.0
    %135 = vmatpush.msra.mxu0 0.0
    %136 = vmatpush.msra.mxu0 0.0
    %137 = vmatpush.msra.mxu0 0.0
    %138 = vmatpush.msra.mxu0 0.0
    %139 = vmatpush.msra.mxu0 0.0
    %140 = vmatpush.msra.mxu0 0.0
    %141 = vmatpush.msra.mxu0 0.0
    %142 = vmatpush.msra.mxu0 0.0
    %143 = vmatpush.msra.mxu0 0.0
    %144 = vmatpush.msra.mxu0 0.0
    %145 = vmatpush.msra.mxu0 0.0
    %v146 = vand.u32 %v32, 4294901760
    %147 = vmatpush.msra.mxu0 %v146
    %v148 = vand.u32 %v26, 4294901760
    %v149 = vsub.f32 %v26, %v148
    %v150 = vand.u32 %v149, 4294901760
    %151 = vmatmul.f32.gmra.mxu0 %v150
    %v152 = vpop.f32.mrf.mxu0
    %v153 = vadd.f32 %v124, %v152
    %v154 = vand.u32 %v29, 4294901760
    %v155 = vsub.f32 %v29, %v154
    %v156 = vand.u32 %v155, 4294901760
    %157 = vmatmul.f32.gmra.mxu0 %v156
    %v158 = vpop.f32.mrf.mxu0
    %v159 = vadd.f32 %v129, %v158
    %160 = vdwg.mxu0
    %161 = vmatpush.msra.mxu0 0.0
    %162 = vmatpush.msra.mxu0 0.0
    %163 = vmatpush.msra.mxu0 0.0
    %164 = vmatpush.msra.mxu0 0.0
    %165 = vmatpush.msra.mxu0 0.0
    %166 = vmatpush.msra.mxu0 0.0
    %167 = vmatpush.msra.mxu0 0.0
    %168 = vmatpush.msra.mxu0 0.0
    %169 = vmatpush.msra.mxu0 0.0
    %170 = vmatpush.msra.mxu0 0.0
    %171 = vmatpush.msra.mxu0 0.0
    %172 = vmatpush.msra.mxu0 0.0
    %173 = vmatpush.msra.mxu0 0.0
    %174 = vmatpush.msra.mxu0 0.0
    %175 = vmatpush.msra.mxu0 0.0
    %v176 = vand.u32 %v32, 4294901760
    %v177 = vsub.f32 %v32, %v176
    %v178 = vand.u32 %v177, 4294901760
    %179 = vmatpush.msra.mxu0 %v178
    %v180 = vand.u32 %v26, 4294901760
    %181 = vmatmul.f32.gmra.mxu0 %v180
    %v182 = vpop.f32.mrf.mxu0
    %v183 = vadd.f32 %v153, %v182
    %v184 = vand.u32 %v29, 4294901760
    %185 = vmatmul.f32.gmra.mxu0 %v184
    %v186 = vpop.f32.mrf.mxu0
    %v187 = vadd.f32 %v159, %v186
    %188 = vdwg.mxu0
    %189 = vmatpush.msra.mxu0 0.0
    %190 = vmatpush.msra.mxu0 0.0
    %191 = vmatpush.msra.mxu0 0.0
    %192 = vmatpush.msra.mxu0 0.0
    %193 = vmatpush.msra.mxu0 0.0
    %194 = vmatpush.msra.mxu0 0.0
    %195 = vmatpush.msra.mxu0 0.0
    %196 = vmatpush.msra.mxu0 0.0
    %197 = vmatpush.msra.mxu0 0.0
    %198 = vmatpush.msra.mxu0 0.0
    %199 = vmatpush.msra.mxu0 0.0
    %200 = vmatpush.msra.mxu0 0.0
    %201 = vmatpush.msra.mxu0 0.0
    %202 = vmatpush.msra.mxu0 0.0
    %203 = vmatpush.msra.mxu0 0.0
    %v204 = vand.u32 %v32, 4294901760
    %205 = vmatpush.msra.mxu0 %v204
    %v206 = vand.u32 %v26, 4294901760
    %207 = vmatmul.f32.gmra.mxu0 %v206
    %v208 = vpop.f32.mrf.mxu0
    %v209 = vadd.f32 %v183, %v208
    %v210 = vand.u32 %v29, 4294901760
    %211 = vmatmul.f32.gmra.mxu0 %v210
    %v212 = vpop.f32.mrf.mxu0
    %v213 = vadd.f32 %v187, %v212
    %214 = vdwg.mxu0
    %215 = vmatpush.msra.mxu0 0.0
    %216 = vmatpush.msra.mxu0 0.0
    %217 = vmatpush.msra.mxu0 0.0
    %218 = vmatpush.msra.mxu0 0.0
    %219 = vmatpush.msra.mxu0 0.0
    %220 = vmatpush.msra.mxu0 0.0
    %221 = vmatpush.msra.mxu0 0.0
    %222 = vmatpush.msra.mxu0 0.0
    %223 = vmatpush.msra.mxu0 0.0
    %224 = vmatpush.msra.mxu0 0.0
    %225 = vmatpush.msra.mxu0 0.0
    %226 = vmatpush.msra.mxu0 0.0
    %227 = vmatpush.msra.mxu0 0.0
    %228 = vmatpush.msra.mxu0 0.0
    %229 = vmatpush.msra.mxu0 0.0
    %v230 = vand.u32 %v34, 4294901760
    %231 = vmatpush.msra.mxu0 %v230
    %v232 = vand.u32 %v26, 4294901760
    %v233 = vsub.f32 %v26, %v232
    %v234 = vand.u32 %v233, 4294901760
    %v235 = vsub.f32 %v233, %v234
    %v236 = vand.u32 %v235, 4294901760
    %237 = vmatmul.f32.gmra.mxu0 %v236
    %v238 = vpop.f32.mrf.mxu0
    %v239 = vadd.f32 0.0, %v238
    %v240 = vand.u32 %v29, 4294901760
    %v241 = vsub.f32 %v29, %v240
    %v242 = vand.u32 %v241, 4294901760
    %v243 = vsub.f32 %v241, %v242
    %v244 = vand.u32 %v243, 4294901760
    %245 = vmatmul.f32.gmra.mxu0 %v244
    %v246 = vpop.f32.mrf.mxu0
    %v247 = vadd.f32 0.0, %v246
    %248 = vdwg.mxu0
    %249 = vmatpush.msra.mxu0 0.0
    %250 = vmatpush.msra.mxu0 0.0
    %251 = vmatpush.msra.mxu0 0.0
    %252 = vmatpush.msra.mxu0 0.0
    %253 = vmatpush.msra.mxu0 0.0
    %254 = vmatpush.msra.mxu0 0.0
    %255 = vmatpush.msra.mxu0 0.0
    %256 = vmatpush.msra.mxu0 0.0
    %257 = vmatpush.msra.mxu0 0.0
    %258 = vmatpush.msra.mxu0 0.0
    %259 = vmatpush.msra.mxu0 0.0
    %260 = vmatpush.msra.mxu0 0.0
    %261 = vmatpush.msra.mxu0 0.0
    %262 = vmatpush.msra.mxu0 0.0
    %263 = vmatpush.msra.mxu0 0.0
    %v264 = vand.u32 %v34, 4294901760
    %v265 = vsub.f32 %v34, %v264
    %v266 = vand.u32 %v265, 4294901760
    %v267 = vsub.f32 %v265, %v266
    %v268 = vand.u32 %v267, 4294901760
    %269 = vmatpush.msra.mxu0 %v268
    %v270 = vand.u32 %v26, 4294901760
    %271 = vmatmul.f32.gmra.mxu0 %v270
    %v272 = vpop.f32.mrf.mxu0
    %v273 = vadd.f32 %v239, %v272
    %v274 = vand.u32 %v29, 4294901760
    %275 = vmatmul.f32.gmra.mxu0 %v274
    %v276 = vpop.f32.mrf.mxu0
    %v277 = vadd.f32 %v247, %v276
    %278 = vdwg.mxu0
    %279 = vmatpush.msra.mxu0 0.0
    %280 = vmatpush.msra.mxu0 0.0
    %281 = vmatpush.msra.mxu0 0.0
    %282 = vmatpush.msra.mxu0 0.0
    %283 = vmatpush.msra.mxu0 0.0
    %284 = vmatpush.msra.mxu0 0.0
    %285 = vmatpush.msra.mxu0 0.0
    %286 = vmatpush.msra.mxu0 0.0
    %287 = vmatpush.msra.mxu0 0.0
    %288 = vmatpush.msra.mxu0 0.0
    %289 = vmatpush.msra.mxu0 0.0
    %290 = vmatpush.msra.mxu0 0.0
    %291 = vmatpush.msra.mxu0 0.0
    %292 = vmatpush.msra.mxu0 0.0
    %293 = vmatpush.msra.mxu0 0.0
    %v294 = vand.u32 %v34, 4294901760
    %v295 = vsub.f32 %v34, %v294
    %296 = vmatpush.msra.mxu0 %v295
    %v297 = vand.u32 %v26, 4294901760
    %v298 = vsub.f32 %v26, %v297
    %299 = vmatmul.f32.gmra.mxu0 %v298
    %v300 = vpop.f32.mrf.mxu0
    %v301 = vadd.f32 %v273, %v300
    %v302 = vand.u32 %v29, 4294901760
    %v303 = vsub.f32 %v29, %v302
    %304 = vmatmul.f32.gmra.mxu0 %v303
    %v305 = vpop.f32.mrf.mxu0
    %v306 = vadd.f32 %v277, %v305
    %307 = vdwg.mxu0
    %308 = vmatpush.msra.mxu0 0.0
    %309 = vmatpush.msra.mxu0 0.0
    %310 = vmatpush.msra.mxu0 0.0
    %311 = vmatpush.msra.mxu0 0.0
    %312 = vmatpush.msra.mxu0 0.0
    %313 = vmatpush.msra.mxu0 0.0
    %314 = vmatpush.msra.mxu0 0.0
    %315 = vmatpush.msra.mxu0 0.0
    %316 = vmatpush.msra.mxu0 0.0
    %317 = vmatpush.msra.mxu0 0.0
    %318 = vmatpush.msra.mxu0 0.0
    %319 = vmatpush.msra.mxu0 0.0
    %320 = vmatpush.msra.mxu0 0.0
    %321 = vmatpush.msra.mxu0 0.0
    %322 = vmatpush.msra.mxu0 0.0
    %v323 = vand.u32 %v34, 4294901760
    %324 = vmatpush.msra.mxu0 %v323
    %v325 = vand.u32 %v26, 4294901760
    %v326 = vsub.f32 %v26, %v325
    %v327 = vand.u32 %v326, 4294901760
    %328 = vmatmul.f32.gmra.mxu0 %v327
    %v329 = vpop.f32.mrf.mxu0
    %v330 = vadd.f32 %v301, %v329
    %v331 = vand.u32 %v29, 4294901760
    %v332 = vsub.f32 %v29, %v331
    %v333 = vand.u32 %v332, 4294901760
    %334 = vmatmul.f32.gmra.mxu0 %v333
    %v335 = vpop.f32.mrf.mxu0
    %v336 = vadd.f32 %v306, %v335
    %337 = vdwg.mxu0
    %338 = vmatpush.msra.mxu0 0.0
    %339 = vmatpush.msra.mxu0 0.0
    %340 = vmatpush.msra.mxu0 0.0
    %341 = vmatpush.msra.mxu0 0.0
    %342 = vmatpush.msra.mxu0 0.0
    %343 = vmatpush.msra.mxu0 0.0
    %344 = vmatpush.msra.mxu0 0.0
    %345 = vmatpush.msra.mxu0 0.0
    %346 = vmatpush.msra.mxu0 0.0
    %347 = vmatpush.msra.mxu0 0.0
    %348 = vmatpush.msra.mxu0 0.0
    %349 = vmatpush.msra.mxu0 0.0
    %350 = vmatpush.msra.mxu0 0.0
    %351 = vmatpush.msra.mxu0 0.0
    %352 = vmatpush.msra.mxu0 0.0
    %v353 = vand.u32 %v34, 4294901760
    %v354 = vsub.f32 %v34, %v353
    %v355 = vand.u32 %v354, 4294901760
    %356 = vmatpush.msra.mxu0 %v355
    %v357 = vand.u32 %v26, 4294901760
    %358 = vmatmul.f32.gmra.mxu0 %v357
    %v359 = vpop.f32.mrf.mxu0
    %v360 = vadd.f32 %v330, %v359
    %v361 = vand.u32 %v29, 4294901760
    %362 = vmatmul.f32.gmra.mxu0 %v361
    %v363 = vpop.f32.mrf.mxu0
    %v364 = vadd.f32 %v336, %v363
    %365 = vdwg.mxu0
    %366 = vmatpush.msra.mxu0 0.0
    %367 = vmatpush.msra.mxu0 0.0
    %368 = vmatpush.msra.mxu0 0.0
    %369 = vmatpush.msra.mxu0 0.0
    %370 = vmatpush.msra.mxu0 0.0
    %371 = vmatpush.msra.mxu0 0.0
    %372 = vmatpush.msra.mxu0 0.0
    %373 = vmatpush.msra.mxu0 0.0
    %374 = vmatpush.msra.mxu0 0.0
    %375 = vmatpush.msra.mxu0 0.0
    %376 = vmatpush.msra.mxu0 0.0
    %377 = vmatpush.msra.mxu0 0.0
    %378 = vmatpush.msra.mxu0 0.0
    %379 = vmatpush.msra.mxu0 0.0
    %380 = vmatpush.msra.mxu0 0.0
    %v381 = vand.u32 %v34, 4294901760
    %382 = vmatpush.msra.mxu0 %v381
    %v383 = vand.u32 %v26, 4294901760
    %384 = vmatmul.f32.gmra.mxu0 %v383
    %v385 = vpop.f32.mrf.mxu0
    %v386 = vadd.f32 %v360, %v385
    %v387 = vand.u32 %v29, 4294901760
    %388 = vmatmul.f32.gmra.mxu0 %v387
    %v389 = vpop.f32.mrf.mxu0
    %v390 = vadd.f32 %v364, %v389
    %391 = vdwg.mxu0
    %392 = vmatpush.msra.mxu0 0.0
    %393 = vmatpush.msra.mxu0 0.0
    %394 = vmatpush.msra.mxu0 0.0
    %395 = vmatpush.msra.mxu0 0.0
    %396 = vmatpush.msra.mxu0 0.0
    %397 = vmatpush.msra.mxu0 0.0
    %398 = vmatpush.msra.mxu0 0.0
    %399 = vmatpush.msra.mxu0 0.0
    %400 = vmatpush.msra.mxu0 0.0
    %401 = vmatpush.msra.mxu0 0.0
    %402 = vmatpush.msra.mxu0 0.0
    %403 = vmatpush.msra.mxu0 0.0
    %404 = vmatpush.msra.mxu0 0.0
    %405 = vmatpush.msra.mxu0 0.0
    %406 = vmatpush.msra.mxu0 0.0
    %v407 = vand.u32 %v36, 4294901760
    %408 = vmatpush.msra.mxu0 %v407
    %v409 = vand.u32 %v26, 4294901760
    %v410 = vsub.f32 %v26, %v409
    %v411 = vand.u32 %v410, 4294901760
    %v412 = vsub.f32 %v410, %v411
    %v413 = vand.u32 %v412, 4294901760
    %414 = vmatmul.f32.gmra.mxu0 %v413
    %v415 = vpop.f32.mrf.mxu0
    %v416 = vadd.f32 0.0, %v415
    %v417 = vand.u32 %v29, 4294901760
    %v418 = vsub.f32 %v29, %v417
    %v419 = vand.u32 %v418, 4294901760
    %v420 = vsub.f32 %v418, %v419
    %v421 = vand.u32 %v420, 4294901760
    %422 = vmatmul.f32.gmra.mxu0 %v421
    %v423 = vpop.f32.mrf.mxu0
    %v424 = vadd.f32 0.0, %v423
    %425 = vdwg.mxu0
    %426 = vmatpush.msra.mxu0 0.0
    %427 = vmatpush.msra.mxu0 0.0
    %428 = vmatpush.msra.mxu0 0.0
    %429 = vmatpush.msra.mxu0 0.0
    %430 = vmatpush.msra.mxu0 0.0
    %431 = vmatpush.msra.mxu0 0.0
    %432 = vmatpush.msra.mxu0 0.0
    %433 = vmatpush.msra.mxu0 0.0
    %434 = vmatpush.msra.mxu0 0.0
    %435 = vmatpush.msra.mxu0 0.0
    %436 = vmatpush.msra.mxu0 0.0
    %437 = vmatpush.msra.mxu0 0.0
    %438 = vmatpush.msra.mxu0 0.0
    %439 = vmatpush.msra.mxu0 0.0
    %440 = vmatpush.msra.mxu0 0.0
    %v441 = vand.u32 %v36, 4294901760
    %v442 = vsub.f32 %v36, %v441
    %v443 = vand.u32 %v442, 4294901760
    %v444 = vsub.f32 %v442, %v443
    %v445 = vand.u32 %v444, 4294901760
    %446 = vmatpush.msra.mxu0 %v445
    %v447 = vand.u32 %v26, 4294901760
    %448 = vmatmul.f32.gmra.mxu0 %v447
    %v449 = vpop.f32.mrf.mxu0
    %v450 = vadd.f32 %v416, %v449
    %v451 = vand.u32 %v29, 4294901760
    %452 = vmatmul.f32.gmra.mxu0 %v451
    %v453 = vpop.f32.mrf.mxu0
    %v454 = vadd.f32 %v424, %v453
    %455 = vdwg.mxu0
    %456 = vmatpush.msra.mxu0 0.0
    %457 = vmatpush.msra.mxu0 0.0
    %458 = vmatpush.msra.mxu0 0.0
    %459 = vmatpush.msra.mxu0 0.0
    %460 = vmatpush.msra.mxu0 0.0
    %461 = vmatpush.msra.mxu0 0.0
    %462 = vmatpush.msra.mxu0 0.0
    %463 = vmatpush.msra.mxu0 0.0
    %464 = vmatpush.msra.mxu0 0.0
    %465 = vmatpush.msra.mxu0 0.0
    %466 = vmatpush.msra.mxu0 0.0
    %467 = vmatpush.msra.mxu0 0.0
    %468 = vmatpush.msra.mxu0 0.0
    %469 = vmatpush.msra.mxu0 0.0
    %470 = vmatpush.msra.mxu0 0.0
    %v471 = vand.u32 %v36, 4294901760
    %v472 = vsub.f32 %v36, %v471
    %473 = vmatpush.msra.mxu0 %v472
    %v474 = vand.u32 %v26, 4294901760
    %v475 = vsub.f32 %v26, %v474
    %476 = vmatmul.f32.gmra.mxu0 %v475
    %v477 = vpop.f32.mrf.mxu0
    %v478 = vadd.f32 %v450, %v477
    %v479 = vand.u32 %v29, 4294901760
    %v480 = vsub.f32 %v29, %v479
    %481 = vmatmul.f32.gmra.mxu0 %v480
    %v482 = vpop.f32.mrf.mxu0
    %v483 = vadd.f32 %v454, %v482
    %484 = vdwg.mxu0
    %485 = vmatpush.msra.mxu0 0.0
    %486 = vmatpush.msra.mxu0 0.0
    %487 = vmatpush.msra.mxu0 0.0
    %488 = vmatpush.msra.mxu0 0.0
    %489 = vmatpush.msra.mxu0 0.0
    %490 = vmatpush.msra.mxu0 0.0
    %491 = vmatpush.msra.mxu0 0.0
    %492 = vmatpush.msra.mxu0 0.0
    %493 = vmatpush.msra.mxu0 0.0
    %494 = vmatpush.msra.mxu0 0.0
    %495 = vmatpush.msra.mxu0 0.0
    %496 = vmatpush.msra.mxu0 0.0
    %497 = vmatpush.msra.mxu0 0.0
    %498 = vmatpush.msra.mxu0 0.0
    %499 = vmatpush.msra.mxu0 0.0
    %v500 = vand.u32 %v36, 4294901760
    %501 = vmatpush.msra.mxu0 %v500
    %v502 = vand.u32 %v26, 4294901760
    %v503 = vsub.f32 %v26, %v502
    %v504 = vand.u32 %v503, 4294901760
    %505 = vmatmul.f32.gmra.mxu0 %v504
    %v506 = vpop.f32.mrf.mxu0
    %v507 = vadd.f32 %v478, %v506
    %v508 = vand.u32 %v29, 4294901760
    %v509 = vsub.f32 %v29, %v508
    %v510 = vand.u32 %v509, 4294901760
    %511 = vmatmul.f32.gmra.mxu0 %v510
    %v512 = vpop.f32.mrf.mxu0
    %v513 = vadd.f32 %v483, %v512
    %514 = vdwg.mxu0
    %515 = vmatpush.msra.mxu0 0.0
    %516 = vmatpush.msra.mxu0 0.0
    %517 = vmatpush.msra.mxu0 0.0
    %518 = vmatpush.msra.mxu0 0.0
    %519 = vmatpush.msra.mxu0 0.0
    %520 = vmatpush.msra.mxu0 0.0
    %521 = vmatpush.msra.mxu0 0.0
    %522 = vmatpush.msra.mxu0 0.0
    %523 = vmatpush.msra.mxu0 0.0
    %524 = vmatpush.msra.mxu0 0.0
    %525 = vmatpush.msra.mxu0 0.0
    %526 = vmatpush.msra.mxu0 0.0
    %527 = vmatpush.msra.mxu0 0.0
    %528 = vmatpush.msra.mxu0 0.0
    %529 = vmatpush.msra.mxu0 0.0
    %v530 = vand.u32 %v36, 4294901760
    %v531 = vsub.f32 %v36, %v530
    %v532 = vand.u32 %v531, 4294901760
    %533 = vmatpush.msra.mxu0 %v532
    %v534 = vand.u32 %v26, 4294901760
    %535 = vmatmul.f32.gmra.mxu0 %v534
    %v536 = vpop.f32.mrf.mxu0
    %v537 = vadd.f32 %v507, %v536
    %v538 = vand.u32 %v29, 4294901760
    %539 = vmatmul.f32.gmra.mxu0 %v538
    %v540 = vpop.f32.mrf.mxu0
    %v541 = vadd.f32 %v513, %v540
    %542 = vdwg.mxu0
    %543 = vmatpush.msra.mxu0 0.0
    %544 = vmatpush.msra.mxu0 0.0
    %545 = vmatpush.msra.mxu0 0.0
    %546 = vmatpush.msra.mxu0 0.0
    %547 = vmatpush.msra.mxu0 0.0
    %548 = vmatpush.msra.mxu0 0.0
    %549 = vmatpush.msra.mxu0 0.0
    %550 = vmatpush.msra.mxu0 0.0
    %551 = vmatpush.msra.mxu0 0.0
    %552 = vmatpush.msra.mxu0 0.0
    %553 = vmatpush.msra.mxu0 0.0
    %554 = vmatpush.msra.mxu0 0.0
    %555 = vmatpush.msra.mxu0 0.0
    %556 = vmatpush.msra.mxu0 0.0
    %557 = vmatpush.msra.mxu0 0.0
    %v558 = vand.u32 %v36, 4294901760
    %559 = vmatpush.msra.mxu0 %v558
    %v560 = vand.u32 %v26, 4294901760
    %561 = vmatmul.f32.gmra.mxu0 %v560
    %v562 = vpop.f32.mrf.mxu0
    %v563 = vadd.f32 %v537, %v562
    %v564 = vand.u32 %v29, 4294901760
    %565 = vmatmul.f32.gmra.mxu0 %v564
    %v566 = vpop.f32.mrf.mxu0
    %v567 = vadd.f32 %v541, %v566
    %568 = vdwg.mxu0
    %v569 = vand.u32 2147483647, %v209
    %vm570 = vcmp.le.f32.partialorder %v569, 0.7853982
    %vm571 = vcmp.lt.s32.totalorder %v209, 0
    %v572 = vand.u32 %v209, 2139095040
    %v573 = vshrl.u32 %v572, 23
    %v574 = vsub.s32 %v573, 127
    %v575 = vand.u32 2147483647, %v209
    %v576 = vand.u32 %v575, 8388607
    %v577 = vor.u32 %v576, 8388608
    %v578 = vsub.s32 0, %v577
    %v579 = vadd.s32 %v574, 1
    %vm580 = vcmp.gt.s32.totalorder %v579, 0
    %v581 = vsel %vm580, %v579, 0
    %v582 = vshrl.u32 %v581, 5
    %v583 = vand.u32 %v581, 31
    %v584 = vsub.s32 32, %v583
    %v585 = vshrl.u32 683565275, %v584
    %v586 = vshll.u32 683565275, %v583
    %v587 = vshrl.u32 2475754826, %v584
    %v588 = vor.u32 %v586, %v587
    %v589 = vshll.u32 2475754826, %v583
    %v590 = vshrl.u32 2131351028, %v584
    %v591 = vor.u32 %v589, %v590
    %v592 = vshll.u32 2131351028, %v583
    %v593 = vshrl.u32 2102212464, %v584
    %v594 = vor.u32 %v592, %v593
    %v595 = vshll.u32 2102212464, %v583
    %v596 = vshrl.u32 920167782, %v584
    %v597 = vor.u32 %v595, %v596
    %v598 = vshll.u32 920167782, %v583
    %v599 = vshrl.u32 1326507024, %v584
    %v600 = vor.u32 %v598, %v599
    %vm601 = vcmp.lt.s32.totalorder %v582, 1
    %vm602 = vcmp.lt.s32.totalorder %v582, 2
    %vm603 = vcmp.lt.s32.totalorder %v582, 3
    %vm604 = vcmp.lt.s32.totalorder %v582, 4
    %v605 = vsel %vm601, %v585, %v588
    %v606 = vsel %vm604, %v594, 2102212464
    %v607 = vsel %vm603, %v591, %v606
    %v608 = vsel %vm602, %v605, %v607
    %v609 = vsel %vm601, %v588, %v591
    %v610 = vsel %vm604, %v597, 920167782
    %v611 = vsel %vm603, %v594, %v610
    %v612 = vsel %vm602, %v609, %v611
    %v613 = vsel %vm601, %v591, %v594
    %v614 = vsel %vm604, %v600, 1326507024
    %v615 = vsel %vm603, %v597, %v614
    %v616 = vsel %vm602, %v613, %v615
    %v617 = vshll.u32 %v577, 8
    %v618 = vand.u32 %v617, 65535
    %v619 = vshrl.u32 %v617, 16
    %v620 = vand.u32 %v616, 65535
    %v621 = vshrl.u32 %v616, 16
    %v622 = vmul.u32 %v618, %v620
    %v623 = vmul.u32 %v618, %v621
    %v624 = vmul.u32 %v619, %v620
    %v625 = vmul.u32 %v619, %v621
    %v626 = vshll.u32 %v623, 16
    %v627 = vshrl.u32 %v623, 16
    %v628 = vshll.u32 %v624, 16
    %v629 = vshrl.u32 %v624, 16
    %vm630 = vc.u32 %v622, %v626
    %v631 = vsel %vm630, 1, 0
    %v632 = vadd.s32 %v622, %v626
    %v633 = vadd.s32 %v625, %v631
    %vm634 = vc.u32 %v632, %v628
    %v635 = vsel %vm634, 1, 0
    %v636 = vadd.s32 %v632, %v628
    %v637 = vadd.s32 %v633, %v635
    %v638 = vadd.s32 %v637, %v627
    %v639 = vadd.s32 %v638, %v629
    %v640 = vand.u32 %v617, 65535
    %v641 = vshrl.u32 %v617, 16
    %v642 = vand.u32 %v612, 65535
    %v643 = vshrl.u32 %v612, 16
    %v644 = vmul.u32 %v640, %v642
    %v645 = vmul.u32 %v640, %v643
    %v646 = vmul.u32 %v641, %v642
    %v647 = vmul.u32 %v641, %v643
    %v648 = vshll.u32 %v645, 16
    %v649 = vshrl.u32 %v645, 16
    %v650 = vshll.u32 %v646, 16
    %v651 = vshrl.u32 %v646, 16
    %vm652 = vc.u32 %v644, %v648
    %v653 = vsel %vm652, 1, 0
    %v654 = vadd.s32 %v644, %v648
    %v655 = vadd.s32 %v647, %v653
    %vm656 = vc.u32 %v654, %v650
    %v657 = vsel %vm656, 1, 0
    %v658 = vadd.s32 %v654, %v650
    %v659 = vadd.s32 %v655, %v657
    %v660 = vadd.s32 %v659, %v649
    %v661 = vadd.s32 %v660, %v651
    %v662 = vmul.u32 %v617, %v608
    %v663 = vadd.s32 %v639, %v658
    %vm664 = vc.u32 %v639, %v658
    %v665 = vadd.s32 %v661, 1
    %v666 = vsel %vm664, %v665, %v661
    %v667 = vadd.s32 %v662, %v666
    %v668 = vadd.s32 %v667, 536870912
    %v669 = vshrl.u32 %v668, 30
    %v670 = vshll.u32 %v669, 30
    %v671 = vsub.s32 %v667, %v670
    %vm672 = vcmp.lt.s32.totalorder %v671, 0
    %v673 = vsub.s32 0, %v671
    %v674 = vsel %vm672, %v673, %v671
    %v675 = vclz %v674
    %v676 = vsub.s32 %v675, 2
    %vm677 = vcmp.gt.s32.totalorder 0, %v676
    %v678 = vsel %vm677, 0, %v676
    %v679 = vsub.s32 32, %v678
    %v680 = vshll.u32 %v671, %v678
    %v681 = vshrl.u32 %v663, %v679
    %v682 = vor.u32 %v680, %v681
    %v683 = vsub.s32 4294967266, %v678
    %v684 = vadd.s32 %v683, 127
    %v685 = vshll.u32 %v684, 23
    %v686 = vor.u32 4788187, %v685
    %v687 = vand.u32 2147483647, %v686
    %v689 = vcvt.s32.f32 %v682
    %v690 = vmul.f32 %v689, %v687
    %v691 = vxor.u32 %v690, 2147483648
    %v692 = vsel %vm571, %v691, %v690
    %v693 = vsub.s32 4, %v669
    %v694 = vsel %vm571, %v693, %v669
    %v695 = vsel %vm570, %v209, %v692
    %v696 = vsel %vm570, 0, %v694
    %v697 = vmul.f32 %v695, %v695
    %v698 = vmul.f32 %v697, -0.001358992
    %v699 = vadd.f32 %v698, 0.041655596
    %v700 = vmul.f32 %v697, %v699
    %v701 = vadd.f32 %v700, -0.4999988
    %v702 = vmul.f32 %v697, %v701
    %v703 = vadd.f32 1.0, %v702
    %v704 = vmul.f32 %v695, %v695
    %v705 = vmul.f32 %v704, -0.00019511016
    %v706 = vadd.f32 %v705, 0.008332121
    %v707 = vmul.f32 %v704, %v706
    %v708 = vadd.f32 %v707, -0.16666654
    %v709 = vmul.f32 %v704, %v708
    %v710 = vadd.f32 %v709, 1.0
    %v711 = vmul.f32 %v710, %v695
    %vm712 = vweird.f32 %v209
    %v713 = vadd.s32 %v696, 3
    %v714 = vand.u32 %v713, 3
    %vm715 = vcmp.lt.s32.totalorder %v714, 2
    %vm716 = vcmp.eq.s32.totalorder %v714, 0
    %v717 = vxor.u32 %v711, 2147483648
    %v718 = vsel %vm716, %v703, %v717
    %vm719 = vcmp.eq.s32.totalorder %v714, 2
    %v720 = vxor.u32 %v703, 2147483648
    %v721 = vsel %vm719, %v720, %v711
    %v722 = vsel %vm715, %v718, %v721
    %v723 = vsel %vm712, nan, %v722
    %v724 = vand.u32 2147483647, %v386
    %vm725 = vcmp.le.f32.partialorder %v724, 0.7853982
    %vm726 = vcmp.lt.s32.totalorder %v386, 0
    %v727 = vand.u32 %v386, 2139095040
    %v728 = vshrl.u32 %v727, 23
    %v729 = vsub.s32 %v728, 127
    %v730 = vand.u32 2147483647, %v386
    %v731 = vand.u32 %v730, 8388607
    %v732 = vor.u32 %v731, 8388608
    %v733 = vsub.s32 0, %v732
    %v734 = vadd.s32 %v729, 1
    %vm735 = vcmp.gt.s32.totalorder %v734, 0
    %v736 = vsel %vm735, %v734, 0
    %v737 = vshrl.u32 %v736, 5
    %v738 = vand.u32 %v736, 31
    %v739 = vsub.s32 32, %v738
    %v740 = vshrl.u32 683565275, %v739
    %v741 = vshll.u32 683565275, %v738
    %v742 = vshrl.u32 2475754826, %v739
    %v743 = vor.u32 %v741, %v742
    %v744 = vshll.u32 2475754826, %v738
    %v745 = vshrl.u32 2131351028, %v739
    %v746 = vor.u32 %v744, %v745
    %v747 = vshll.u32 2131351028, %v738
    %v748 = vshrl.u32 2102212464, %v739
    %v749 = vor.u32 %v747, %v748
    %v750 = vshll.u32 2102212464, %v738
    %v751 = vshrl.u32 920167782, %v739
    %v752 = vor.u32 %v750, %v751
    %v753 = vshll.u32 920167782, %v738
    %v754 = vshrl.u32 1326507024, %v739
    %v755 = vor.u32 %v753, %v754
    %vm756 = vcmp.lt.s32.totalorder %v737, 1
    %vm757 = vcmp.lt.s32.totalorder %v737, 2
    %vm758 = vcmp.lt.s32.totalorder %v737, 3
    %vm759 = vcmp.lt.s32.totalorder %v737, 4
    %v760 = vsel %vm756, %v740, %v743
    %v761 = vsel %vm759, %v749, 2102212464
    %v762 = vsel %vm758, %v746, %v761
    %v763 = vsel %vm757, %v760, %v762
    %v764 = vsel %vm756, %v743, %v746
    %v765 = vsel %vm759, %v752, 920167782
    %v766 = vsel %vm758, %v749, %v765
    %v767 = vsel %vm757, %v764, %v766
    %v768 = vsel %vm756, %v746, %v749
    %v769 = vsel %vm759, %v755, 1326507024
    %v770 = vsel %vm758, %v752, %v769
    %v771 = vsel %vm757, %v768, %v770
    %v772 = vshll.u32 %v732, 8
    %v773 = vand.u32 %v772, 65535
    %v774 = vshrl.u32 %v772, 16
    %v775 = vand.u32 %v771, 65535
    %v776 = vshrl.u32 %v771, 16
    %v777 = vmul.u32 %v773, %v775
    %v778 = vmul.u32 %v773, %v776
    %v779 = vmul.u32 %v774, %v775
    %v780 = vmul.u32 %v774, %v776
    %v781 = vshll.u32 %v778, 16
    %v782 = vshrl.u32 %v778, 16
    %v783 = vshll.u32 %v779, 16
    %v784 = vshrl.u32 %v779, 16
    %vm785 = vc.u32 %v777, %v781
    %v786 = vsel %vm785, 1, 0
    %v787 = vadd.s32 %v777, %v781
    %v788 = vadd.s32 %v780, %v786
    %vm789 = vc.u32 %v787, %v783
    %v790 = vsel %vm789, 1, 0
    %v791 = vadd.s32 %v787, %v783
    %v792 = vadd.s32 %v788, %v790
    %v793 = vadd.s32 %v792, %v782
    %v794 = vadd.s32 %v793, %v784
    %v795 = vand.u32 %v772, 65535
    %v796 = vshrl.u32 %v772, 16
    %v797 = vand.u32 %v767, 65535
    %v798 = vshrl.u32 %v767, 16
    %v799 = vmul.u32 %v795, %v797
    %v800 = vmul.u32 %v795, %v798
    %v801 = vmul.u32 %v796, %v797
    %v802 = vmul.u32 %v796, %v798
    %v803 = vshll.u32 %v800, 16
    %v804 = vshrl.u32 %v800, 16
    %v805 = vshll.u32 %v801, 16
    %v806 = vshrl.u32 %v801, 16
    %vm807 = vc.u32 %v799, %v803
    %v808 = vsel %vm807, 1, 0
    %v809 = vadd.s32 %v799, %v803
    %v810 = vadd.s32 %v802, %v808
    %vm811 = vc.u32 %v809, %v805
    %v812 = vsel %vm811, 1, 0
    %v813 = vadd.s32 %v809, %v805
    %v814 = vadd.s32 %v810, %v812
    %v815 = vadd.s32 %v814, %v804
    %v816 = vadd.s32 %v815, %v806
    %v817 = vmul.u32 %v772, %v763
    %v818 = vadd.s32 %v794, %v813
    %vm819 = vc.u32 %v794, %v813
    %v820 = vadd.s32 %v816, 1
    %v821 = vsel %vm819, %v820, %v816
    %v822 = vadd.s32 %v817, %v821
    %v823 = vadd.s32 %v822, 536870912
    %v824 = vshrl.u32 %v823, 30
    %v825 = vshll.u32 %v824, 30
    %v826 = vsub.s32 %v822, %v825
    %vm827 = vcmp.lt.s32.totalorder %v826, 0
    %v828 = vsub.s32 0, %v826
    %v829 = vsel %vm827, %v828, %v826
    %v830 = vclz %v829
    %v831 = vsub.s32 %v830, 2
    %vm832 = vcmp.gt.s32.totalorder 0, %v831
    %v833 = vsel %vm832, 0, %v831
    %v834 = vsub.s32 32, %v833
    %v835 = vshll.u32 %v826, %v833
    %v836 = vshrl.u32 %v818, %v834
    %v837 = vor.u32 %v835, %v836
    %v838 = vsub.s32 4294967266, %v833
    %v839 = vadd.s32 %v838, 127
    %v840 = vshll.u32 %v839, 23
    %v841 = vor.u32 4788187, %v840
    %v842 = vand.u32 2147483647, %v841
    %v844 = vcvt.s32.f32 %v837
    %v845 = vmul.f32 %v844, %v842
    %v846 = vxor.u32 %v845, 2147483648
    %v847 = vsel %vm726, %v846, %v845
    %v848 = vsub.s32 4, %v824
    %v849 = vsel %vm726, %v848, %v824
    %v850 = vsel %vm725, %v386, %v847
    %v851 = vsel %vm725, 0, %v849
    %v852 = vmul.f32 %v850, %v850
    %v853 = vmul.f32 %v852, -0.001358992
    %v854 = vadd.f32 %v853, 0.041655596
    %v855 = vmul.f32 %v852, %v854
    %v856 = vadd.f32 %v855, -0.4999988
    %v857 = vmul.f32 %v852, %v856
    %v858 = vadd.f32 1.0, %v857
    %v859 = vmul.f32 %v850, %v850
    %v860 = vmul.f32 %v859, -0.00019511016
    %v861 = vadd.f32 %v860, 0.008332121
    %v862 = vmul.f32 %v859, %v861
    %v863 = vadd.f32 %v862, -0.16666654
    %v864 = vmul.f32 %v859, %v863
    %v865 = vadd.f32 %v864, 1.0
    %v866 = vmul.f32 %v865, %v850
    %vm867 = vweird.f32 %v386
    %v868 = vadd.s32 %v851, 3
    %v869 = vand.u32 %v868, 3
    %vm870 = vcmp.lt.s32.totalorder %v869, 2
    %vm871 = vcmp.eq.s32.totalorder %v869, 0
    %v872 = vxor.u32 %v866, 2147483648
    %v873 = vsel %vm871, %v858, %v872
    %vm874 = vcmp.eq.s32.totalorder %v869, 2
    %v875 = vxor.u32 %v858, 2147483648
    %v876 = vsel %vm874, %v875, %v866
    %v877 = vsel %vm870, %v873, %v876
    %v878 = vsel %vm867, nan, %v877
    %v879 = vand.u32 2147483647, %v563
    %vm880 = vcmp.le.f32.partialorder %v879, 0.7853982
    %vm881 = vcmp.lt.s32.totalorder %v563, 0
    %v882 = vand.u32 %v563, 2139095040
    %v883 = vshrl.u32 %v882, 23
    %v884 = vsub.s32 %v883, 127
    %v885 = vand.u32 2147483647, %v563
    %v886 = vand.u32 %v885, 8388607
    %v887 = vor.u32 %v886, 8388608
    %v888 = vsub.s32 0, %v887
    %v889 = vadd.s32 %v884, 1
    %vm890 = vcmp.gt.s32.totalorder %v889, 0
    %v891 = vsel %vm890, %v889, 0
    %v892 = vshrl.u32 %v891, 5
    %v893 = vand.u32 %v891, 31
    %v894 = vsub.s32 32, %v893
    %v895 = vshrl.u32 683565275, %v894
    %v896 = vshll.u32 683565275, %v893
    %v897 = vshrl.u32 2475754826, %v894
    %v898 = vor.u32 %v896, %v897
    %v899 = vshll.u32 2475754826, %v893
    %v900 = vshrl.u32 2131351028, %v894
    %v901 = vor.u32 %v899, %v900
    %v902 = vshll.u32 2131351028, %v893
    %v903 = vshrl.u32 2102212464, %v894
    %v904 = vor.u32 %v902, %v903
    %v905 = vshll.u32 2102212464, %v893
    %v906 = vshrl.u32 920167782, %v894
    %v907 = vor.u32 %v905, %v906
    %v908 = vshll.u32 920167782, %v893
    %v909 = vshrl.u32 1326507024, %v894
    %v910 = vor.u32 %v908, %v909
    %vm911 = vcmp.lt.s32.totalorder %v892, 1
    %vm912 = vcmp.lt.s32.totalorder %v892, 2
    %vm913 = vcmp.lt.s32.totalorder %v892, 3
    %vm914 = vcmp.lt.s32.totalorder %v892, 4
    %v915 = vsel %vm911, %v895, %v898
    %v916 = vsel %vm914, %v904, 2102212464
    %v917 = vsel %vm913, %v901, %v916
    %v918 = vsel %vm912, %v915, %v917
    %v919 = vsel %vm911, %v898, %v901
    %v920 = vsel %vm914, %v907, 920167782
    %v921 = vsel %vm913, %v904, %v920
    %v922 = vsel %vm912, %v919, %v921
    %v923 = vsel %vm911, %v901, %v904
    %v924 = vsel %vm914, %v910, 1326507024
    %v925 = vsel %vm913, %v907, %v924
    %v926 = vsel %vm912, %v923, %v925
    %v927 = vshll.u32 %v887, 8
    %v928 = vand.u32 %v927, 65535
    %v929 = vshrl.u32 %v927, 16
    %v930 = vand.u32 %v926, 65535
    %v931 = vshrl.u32 %v926, 16
    %v932 = vmul.u32 %v928, %v930
    %v933 = vmul.u32 %v928, %v931
    %v934 = vmul.u32 %v929, %v930
    %v935 = vmul.u32 %v929, %v931
    %v936 = vshll.u32 %v933, 16
    %v937 = vshrl.u32 %v933, 16
    %v938 = vshll.u32 %v934, 16
    %v939 = vshrl.u32 %v934, 16
    %vm940 = vc.u32 %v932, %v936
    %v941 = vsel %vm940, 1, 0
    %v942 = vadd.s32 %v932, %v936
    %v943 = vadd.s32 %v935, %v941
    %vm944 = vc.u32 %v942, %v938
    %v945 = vsel %vm944, 1, 0
    %v946 = vadd.s32 %v942, %v938
    %v947 = vadd.s32 %v943, %v945
    %v948 = vadd.s32 %v947, %v937
    %v949 = vadd.s32 %v948, %v939
    %v950 = vand.u32 %v927, 65535
    %v951 = vshrl.u32 %v927, 16
    %v952 = vand.u32 %v922, 65535
    %v953 = vshrl.u32 %v922, 16
    %v954 = vmul.u32 %v950, %v952
    %v955 = vmul.u32 %v950, %v953
    %v956 = vmul.u32 %v951, %v952
    %v957 = vmul.u32 %v951, %v953
    %v958 = vshll.u32 %v955, 16
    %v959 = vshrl.u32 %v955, 16
    %v960 = vshll.u32 %v956, 16
    %v961 = vshrl.u32 %v956, 16
    %vm962 = vc.u32 %v954, %v958
    %v963 = vsel %vm962, 1, 0
    %v964 = vadd.s32 %v954, %v958
    %v965 = vadd.s32 %v957, %v963
    %vm966 = vc.u32 %v964, %v960
    %v967 = vsel %vm966, 1, 0
    %v968 = vadd.s32 %v964, %v960
    %v969 = vadd.s32 %v965, %v967
    %v970 = vadd.s32 %v969, %v959
    %v971 = vadd.s32 %v970, %v961
    %v972 = vmul.u32 %v927, %v918
    %v973 = vadd.s32 %v949, %v968
    %vm974 = vc.u32 %v949, %v968
    %v975 = vadd.s32 %v971, 1
    %v976 = vsel %vm974, %v975, %v971
    %v977 = vadd.s32 %v972, %v976
    %v978 = vadd.s32 %v977, 536870912
    %v979 = vshrl.u32 %v978, 30
    %v980 = vshll.u32 %v979, 30
    %v981 = vsub.s32 %v977, %v980
    %vm982 = vcmp.lt.s32.totalorder %v981, 0
    %v983 = vsub.s32 0, %v981
    %v984 = vsel %vm982, %v983, %v981
    %v985 = vclz %v984
    %v986 = vsub.s32 %v985, 2
    %vm987 = vcmp.gt.s32.totalorder 0, %v986
    %v988 = vsel %vm987, 0, %v986
    %v989 = vsub.s32 32, %v988
    %v990 = vshll.u32 %v981, %v988
    %v991 = vshrl.u32 %v973, %v989
    %v992 = vor.u32 %v990, %v991
    %v993 = vsub.s32 4294967266, %v988
    %v994 = vadd.s32 %v993, 127
    %v995 = vshll.u32 %v994, 23
    %v996 = vor.u32 4788187, %v995
    %v997 = vand.u32 2147483647, %v996
    %v999 = vcvt.s32.f32 %v992
    %v1000 = vmul.f32 %v999, %v997
    %v1001 = vxor.u32 %v1000, 2147483648
    %v1002 = vsel %vm881, %v1001, %v1000
    %v1003 = vsub.s32 4, %v979
    %v1004 = vsel %vm881, %v1003, %v979
    %v1005 = vsel %vm880, %v563, %v1002
    %v1006 = vsel %vm880, 0, %v1004
    %v1007 = vmul.f32 %v1005, %v1005
    %v1008 = vmul.f32 %v1007, -0.001358992
    %v1009 = vadd.f32 %v1008, 0.041655596
    %v1010 = vmul.f32 %v1007, %v1009
    %v1011 = vadd.f32 %v1010, -0.4999988
    %v1012 = vmul.f32 %v1007, %v1011
    %v1013 = vadd.f32 1.0, %v1012
    %v1014 = vmul.f32 %v1005, %v1005
    %v1015 = vmul.f32 %v1014, -0.00019511016
    %v1016 = vadd.f32 %v1015, 0.008332121
    %v1017 = vmul.f32 %v1014, %v1016
    %v1018 = vadd.f32 %v1017, -0.16666654
    %v1019 = vmul.f32 %v1014, %v1018
    %v1020 = vadd.f32 %v1019, 1.0
    %v1021 = vmul.f32 %v1020, %v1005
    %vm1022 = vweird.f32 %v563
    %v1023 = vadd.s32 %v1006, 3
    %v1024 = vand.u32 %v1023, 3
    %vm1025 = vcmp.lt.s32.totalorder %v1024, 2
    %vm1026 = vcmp.eq.s32.totalorder %v1024, 0
    %v1027 = vxor.u32 %v1021, 2147483648
    %v1028 = vsel %vm1026, %v1013, %v1027
    %vm1029 = vcmp.eq.s32.totalorder %v1024, 2
    %v1030 = vxor.u32 %v1013, 2147483648
    %v1031 = vsel %vm1029, %v1030, %v1021
    %v1032 = vsel %vm1025, %v1028, %v1031
    %v1033 = vsel %vm1022, nan, %v1032
    %v1034 = vand.u32 2147483647, %v213
    %vm1035 = vcmp.le.f32.partialorder %v1034, 0.7853982
    %vm1036 = vcmp.lt.s32.totalorder %v213, 0
    %v1037 = vand.u32 %v213, 2139095040
    %v1038 = vshrl.u32 %v1037, 23
    %v1039 = vsub.s32 %v1038, 127
    %v1040 = vand.u32 2147483647, %v213
    %v1041 = vand.u32 %v1040, 8388607
    %v1042 = vor.u32 %v1041, 8388608
    %v1043 = vsub.s32 0, %v1042
    %v1044 = vadd.s32 %v1039, 1
    %vm1045 = vcmp.gt.s32.totalorder %v1044, 0
    %v1046 = vsel %vm1045, %v1044, 0
    %v1047 = vshrl.u32 %v1046, 5
    %v1048 = vand.u32 %v1046, 31
    %v1049 = vsub.s32 32, %v1048
    %v1050 = vshrl.u32 683565275, %v1049
    %v1051 = vshll.u32 683565275, %v1048
    %v1052 = vshrl.u32 2475754826, %v1049
    %v1053 = vor.u32 %v1051, %v1052
    %v1054 = vshll.u32 2475754826, %v1048
    %v1055 = vshrl.u32 2131351028, %v1049
    %v1056 = vor.u32 %v1054, %v1055
    %v1057 = vshll.u32 2131351028, %v1048
    %v1058 = vshrl.u32 2102212464, %v1049
    %v1059 = vor.u32 %v1057, %v1058
    %v1060 = vshll.u32 2102212464, %v1048
    %v1061 = vshrl.u32 920167782, %v1049
    %v1062 = vor.u32 %v1060, %v1061
    %v1063 = vshll.u32 920167782, %v1048
    %v1064 = vshrl.u32 1326507024, %v1049
    %v1065 = vor.u32 %v1063, %v1064
    %vm1066 = vcmp.lt.s32.totalorder %v1047, 1
    %vm1067 = vcmp.lt.s32.totalorder %v1047, 2
    %vm1068 = vcmp.lt.s32.totalorder %v1047, 3
    %vm1069 = vcmp.lt.s32.totalorder %v1047, 4
    %v1070 = vsel %vm1066, %v1050, %v1053
    %v1071 = vsel %vm1069, %v1059, 2102212464
    %v1072 = vsel %vm1068, %v1056, %v1071
    %v1073 = vsel %vm1067, %v1070, %v1072
    %v1074 = vsel %vm1066, %v1053, %v1056
    %v1075 = vsel %vm1069, %v1062, 920167782
    %v1076 = vsel %vm1068, %v1059, %v1075
    %v1077 = vsel %vm1067, %v1074, %v1076
    %v1078 = vsel %vm1066, %v1056, %v1059
    %v1079 = vsel %vm1069, %v1065, 1326507024
    %v1080 = vsel %vm1068, %v1062, %v1079
    %v1081 = vsel %vm1067, %v1078, %v1080
    %v1082 = vshll.u32 %v1042, 8
    %v1083 = vand.u32 %v1082, 65535
    %v1084 = vshrl.u32 %v1082, 16
    %v1085 = vand.u32 %v1081, 65535
    %v1086 = vshrl.u32 %v1081, 16
    %v1087 = vmul.u32 %v1083, %v1085
    %v1088 = vmul.u32 %v1083, %v1086
    %v1089 = vmul.u32 %v1084, %v1085
    %v1090 = vmul.u32 %v1084, %v1086
    %v1091 = vshll.u32 %v1088, 16
    %v1092 = vshrl.u32 %v1088, 16
    %v1093 = vshll.u32 %v1089, 16
    %v1094 = vshrl.u32 %v1089, 16
    %vm1095 = vc.u32 %v1087, %v1091
    %v1096 = vsel %vm1095, 1, 0
    %v1097 = vadd.s32 %v1087, %v1091
    %v1098 = vadd.s32 %v1090, %v1096
    %vm1099 = vc.u32 %v1097, %v1093
    %v1100 = vsel %vm1099, 1, 0
    %v1101 = vadd.s32 %v1097, %v1093
    %v1102 = vadd.s32 %v1098, %v1100
    %v1103 = vadd.s32 %v1102, %v1092
    %v1104 = vadd.s32 %v1103, %v1094
    %v1105 = vand.u32 %v1082, 65535
    %v1106 = vshrl.u32 %v1082, 16
    %v1107 = vand.u32 %v1077, 65535
    %v1108 = vshrl.u32 %v1077, 16
    %v1109 = vmul.u32 %v1105, %v1107
    %v1110 = vmul.u32 %v1105, %v1108
    %v1111 = vmul.u32 %v1106, %v1107
    %v1112 = vmul.u32 %v1106, %v1108
    %v1113 = vshll.u32 %v1110, 16
    %v1114 = vshrl.u32 %v1110, 16
    %v1115 = vshll.u32 %v1111, 16
    %v1116 = vshrl.u32 %v1111, 16
    %vm1117 = vc.u32 %v1109, %v1113
    %v1118 = vsel %vm1117, 1, 0
    %v1119 = vadd.s32 %v1109, %v1113
    %v1120 = vadd.s32 %v1112, %v1118
    %vm1121 = vc.u32 %v1119, %v1115
    %v1122 = vsel %vm1121, 1, 0
    %v1123 = vadd.s32 %v1119, %v1115
    %v1124 = vadd.s32 %v1120, %v1122
    %v1125 = vadd.s32 %v1124, %v1114
    %v1126 = vadd.s32 %v1125, %v1116
    %v1127 = vmul.u32 %v1082, %v1073
    %v1128 = vadd.s32 %v1104, %v1123
    %vm1129 = vc.u32 %v1104, %v1123
    %v1130 = vadd.s32 %v1126, 1
    %v1131 = vsel %vm1129, %v1130, %v1126
    %v1132 = vadd.s32 %v1127, %v1131
    %v1133 = vadd.s32 %v1132, 536870912
    %v1134 = vshrl.u32 %v1133, 30
    %v1135 = vshll.u32 %v1134, 30
    %v1136 = vsub.s32 %v1132, %v1135
    %vm1137 = vcmp.lt.s32.totalorder %v1136, 0
    %v1138 = vsub.s32 0, %v1136
    %v1139 = vsel %vm1137, %v1138, %v1136
    %v1140 = vclz %v1139
    %v1141 = vsub.s32 %v1140, 2
    %vm1142 = vcmp.gt.s32.totalorder 0, %v1141
    %v1143 = vsel %vm1142, 0, %v1141
    %v1144 = vsub.s32 32, %v1143
    %v1145 = vshll.u32 %v1136, %v1143
    %v1146 = vshrl.u32 %v1128, %v1144
    %v1147 = vor.u32 %v1145, %v1146
    %v1148 = vsub.s32 4294967266, %v1143
    %v1149 = vadd.s32 %v1148, 127
    %v1150 = vshll.u32 %v1149, 23
    %v1151 = vor.u32 4788187, %v1150
    %v1152 = vand.u32 2147483647, %v1151
    %v1154 = vcvt.s32.f32 %v1147
    %v1155 = vmul.f32 %v1154, %v1152
    %v1156 = vxor.u32 %v1155, 2147483648
    %v1157 = vsel %vm1036, %v1156, %v1155
    %v1158 = vsub.s32 4, %v1134
    %v1159 = vsel %vm1036, %v1158, %v1134
    %v1160 = vsel %vm1035, %v213, %v1157
    %v1161 = vsel %vm1035, 0, %v1159
    %v1162 = vmul.f32 %v1160, %v1160
    %v1163 = vmul.f32 %v1162, -0.001358992
    %v1164 = vadd.f32 %v1163, 0.041655596
    %v1165 = vmul.f32 %v1162, %v1164
    %v1166 = vadd.f32 %v1165, -0.4999988
    %v1167 = vmul.f32 %v1162, %v1166
    %v1168 = vadd.f32 1.0, %v1167
    %v1169 = vmul.f32 %v1160, %v1160
    %v1170 = vmul.f32 %v1169, -0.00019511016
    %v1171 = vadd.f32 %v1170, 0.008332121
    %v1172 = vmul.f32 %v1169, %v1171
    %v1173 = vadd.f32 %v1172, -0.16666654
    %v1174 = vmul.f32 %v1169, %v1173
    %v1175 = vadd.f32 %v1174, 1.0
    %v1176 = vmul.f32 %v1175, %v1160
    %vm1177 = vweird.f32 %v213
    %v1178 = vadd.s32 %v1161, 3
    %v1179 = vand.u32 %v1178, 3
    %vm1180 = vcmp.lt.s32.totalorder %v1179, 2
    %vm1181 = vcmp.eq.s32.totalorder %v1179, 0
    %v1182 = vxor.u32 %v1176, 2147483648
    %v1183 = vsel %vm1181, %v1168, %v1182
    %vm1184 = vcmp.eq.s32.totalorder %v1179, 2
    %v1185 = vxor.u32 %v1168, 2147483648
    %v1186 = vsel %vm1184, %v1185, %v1176
    %v1187 = vsel %vm1180, %v1183, %v1186
    %v1188 = vsel %vm1177, nan, %v1187
    %v1189 = vand.u32 2147483647, %v390
    %vm1190 = vcmp.le.f32.partialorder %v1189, 0.7853982
    %vm1191 = vcmp.lt.s32.totalorder %v390, 0
    %v1192 = vand.u32 %v390, 2139095040
    %v1193 = vshrl.u32 %v1192, 23
    %v1194 = vsub.s32 %v1193, 127
    %v1195 = vand.u32 2147483647, %v390
    %v1196 = vand.u32 %v1195, 8388607
    %v1197 = vor.u32 %v1196, 8388608
    %v1198 = vsub.s32 0, %v1197
    %v1199 = vadd.s32 %v1194, 1
    %vm1200 = vcmp.gt.s32.totalorder %v1199, 0
    %v1201 = vsel %vm1200, %v1199, 0
    %v1202 = vshrl.u32 %v1201, 5
    %v1203 = vand.u32 %v1201, 31
    %v1204 = vsub.s32 32, %v1203
    %v1205 = vshrl.u32 683565275, %v1204
    %v1206 = vshll.u32 683565275, %v1203
    %v1207 = vshrl.u32 2475754826, %v1204
    %v1208 = vor.u32 %v1206, %v1207
    %v1209 = vshll.u32 2475754826, %v1203
    %v1210 = vshrl.u32 2131351028, %v1204
    %v1211 = vor.u32 %v1209, %v1210
    %v1212 = vshll.u32 2131351028, %v1203
    %v1213 = vshrl.u32 2102212464, %v1204
    %v1214 = vor.u32 %v1212, %v1213
    %v1215 = vshll.u32 2102212464, %v1203
    %v1216 = vshrl.u32 920167782, %v1204
    %v1217 = vor.u32 %v1215, %v1216
    %v1218 = vshll.u32 920167782, %v1203
    %v1219 = vshrl.u32 1326507024, %v1204
    %v1220 = vor.u32 %v1218, %v1219
    %vm1221 = vcmp.lt.s32.totalorder %v1202, 1
    %vm1222 = vcmp.lt.s32.totalorder %v1202, 2
    %vm1223 = vcmp.lt.s32.totalorder %v1202, 3
    %vm1224 = vcmp.lt.s32.totalorder %v1202, 4
    %v1225 = vsel %vm1221, %v1205, %v1208
    %v1226 = vsel %vm1224, %v1214, 2102212464
    %v1227 = vsel %vm1223, %v1211, %v1226
    %v1228 = vsel %vm1222, %v1225, %v1227
    %v1229 = vsel %vm1221, %v1208, %v1211
    %v1230 = vsel %vm1224, %v1217, 920167782
    %v1231 = vsel %vm1223, %v1214, %v1230
    %v1232 = vsel %vm1222, %v1229, %v1231
    %v1233 = vsel %vm1221, %v1211, %v1214
    %v1234 = vsel %vm1224, %v1220, 1326507024
    %v1235 = vsel %vm1223, %v1217, %v1234
    %v1236 = vsel %vm1222, %v1233, %v1235
    %v1237 = vshll.u32 %v1197, 8
    %v1238 = vand.u32 %v1237, 65535
    %v1239 = vshrl.u32 %v1237, 16
    %v1240 = vand.u32 %v1236, 65535
    %v1241 = vshrl.u32 %v1236, 16
    %v1242 = vmul.u32 %v1238, %v1240
    %v1243 = vmul.u32 %v1238, %v1241
    %v1244 = vmul.u32 %v1239, %v1240
    %v1245 = vmul.u32 %v1239, %v1241
    %v1246 = vshll.u32 %v1243, 16
    %v1247 = vshrl.u32 %v1243, 16
    %v1248 = vshll.u32 %v1244, 16
    %v1249 = vshrl.u32 %v1244, 16
    %vm1250 = vc.u32 %v1242, %v1246
    %v1251 = vsel %vm1250, 1, 0
    %v1252 = vadd.s32 %v1242, %v1246
    %v1253 = vadd.s32 %v1245, %v1251
    %vm1254 = vc.u32 %v1252, %v1248
    %v1255 = vsel %vm1254, 1, 0
    %v1256 = vadd.s32 %v1252, %v1248
    %v1257 = vadd.s32 %v1253, %v1255
    %v1258 = vadd.s32 %v1257, %v1247
    %v1259 = vadd.s32 %v1258, %v1249
    %v1260 = vand.u32 %v1237, 65535
    %v1261 = vshrl.u32 %v1237, 16
    %v1262 = vand.u32 %v1232, 65535
    %v1263 = vshrl.u32 %v1232, 16
    %v1264 = vmul.u32 %v1260, %v1262
    %v1265 = vmul.u32 %v1260, %v1263
    %v1266 = vmul.u32 %v1261, %v1262
    %v1267 = vmul.u32 %v1261, %v1263
    %v1268 = vshll.u32 %v1265, 16
    %v1269 = vshrl.u32 %v1265, 16
    %v1270 = vshll.u32 %v1266, 16
    %v1271 = vshrl.u32 %v1266, 16
    %vm1272 = vc.u32 %v1264, %v1268
    %v1273 = vsel %vm1272, 1, 0
    %v1274 = vadd.s32 %v1264, %v1268
    %v1275 = vadd.s32 %v1267, %v1273
    %vm1276 = vc.u32 %v1274, %v1270
    %v1277 = vsel %vm1276, 1, 0
    %v1278 = vadd.s32 %v1274, %v1270
    %v1279 = vadd.s32 %v1275, %v1277
    %v1280 = vadd.s32 %v1279, %v1269
    %v1281 = vadd.s32 %v1280, %v1271
    %v1282 = vmul.u32 %v1237, %v1228
    %v1283 = vadd.s32 %v1259, %v1278
    %vm1284 = vc.u32 %v1259, %v1278
    %v1285 = vadd.s32 %v1281, 1
    %v1286 = vsel %vm1284, %v1285, %v1281
    %v1287 = vadd.s32 %v1282, %v1286
    %v1288 = vadd.s32 %v1287, 536870912
    %v1289 = vshrl.u32 %v1288, 30
    %v1290 = vshll.u32 %v1289, 30
    %v1291 = vsub.s32 %v1287, %v1290
    %vm1292 = vcmp.lt.s32.totalorder %v1291, 0
    %v1293 = vsub.s32 0, %v1291
    %v1294 = vsel %vm1292, %v1293, %v1291
    %v1295 = vclz %v1294
    %v1296 = vsub.s32 %v1295, 2
    %vm1297 = vcmp.gt.s32.totalorder 0, %v1296
    %v1298 = vsel %vm1297, 0, %v1296
    %v1299 = vsub.s32 32, %v1298
    %v1300 = vshll.u32 %v1291, %v1298
    %v1301 = vshrl.u32 %v1283, %v1299
    %v1302 = vor.u32 %v1300, %v1301
    %v1303 = vsub.s32 4294967266, %v1298
    %v1304 = vadd.s32 %v1303, 127
    %v1305 = vshll.u32 %v1304, 23
    %v1306 = vor.u32 4788187, %v1305
    %v1307 = vand.u32 2147483647, %v1306
    %v1309 = vcvt.s32.f32 %v1302
    %v1310 = vmul.f32 %v1309, %v1307
    %v1311 = vxor.u32 %v1310, 2147483648
    %v1312 = vsel %vm1191, %v1311, %v1310
    %v1313 = vsub.s32 4, %v1289
    %v1314 = vsel %vm1191, %v1313, %v1289
    %v1315 = vsel %vm1190, %v390, %v1312
    %v1316 = vsel %vm1190, 0, %v1314
    %v1317 = vmul.f32 %v1315, %v1315
    %v1318 = vmul.f32 %v1317, -0.001358992
    %v1319 = vadd.f32 %v1318, 0.041655596
    %v1320 = vmul.f32 %v1317, %v1319
    %v1321 = vadd.f32 %v1320, -0.4999988
    %v1322 = vmul.f32 %v1317, %v1321
    %v1323 = vadd.f32 1.0, %v1322
    %v1324 = vmul.f32 %v1315, %v1315
    %v1325 = vmul.f32 %v1324, -0.00019511016
    %v1326 = vadd.f32 %v1325, 0.008332121
    %v1327 = vmul.f32 %v1324, %v1326
    %v1328 = vadd.f32 %v1327, -0.16666654
    %v1329 = vmul.f32 %v1324, %v1328
    %v1330 = vadd.f32 %v1329, 1.0
    %v1331 = vmul.f32 %v1330, %v1315
    %vm1332 = vweird.f32 %v390
    %v1333 = vadd.s32 %v1316, 3
    %v1334 = vand.u32 %v1333, 3
    %vm1335 = vcmp.lt.s32.totalorder %v1334, 2
    %vm1336 = vcmp.eq.s32.totalorder %v1334, 0
    %v1337 = vxor.u32 %v1331, 2147483648
    %v1338 = vsel %vm1336, %v1323, %v1337
    %vm1339 = vcmp.eq.s32.totalorder %v1334, 2
    %v1340 = vxor.u32 %v1323, 2147483648
    %v1341 = vsel %vm1339, %v1340, %v1331
    %v1342 = vsel %vm1335, %v1338, %v1341
    %v1343 = vsel %vm1332, nan, %v1342
    %v1344 = vand.u32 2147483647, %v567
    %vm1345 = vcmp.le.f32.partialorder %v1344, 0.7853982
    %vm1346 = vcmp.lt.s32.totalorder %v567, 0
    %v1347 = vand.u32 %v567, 2139095040
    %v1348 = vshrl.u32 %v1347, 23
    %v1349 = vsub.s32 %v1348, 127
    %v1350 = vand.u32 2147483647, %v567
    %v1351 = vand.u32 %v1350, 8388607
    %v1352 = vor.u32 %v1351, 8388608
    %v1353 = vsub.s32 0, %v1352
    %v1354 = vadd.s32 %v1349, 1
    %vm1355 = vcmp.gt.s32.totalorder %v1354, 0
    %v1356 = vsel %vm1355, %v1354, 0
    %v1357 = vshrl.u32 %v1356, 5
    %v1358 = vand.u32 %v1356, 31
    %v1359 = vsub.s32 32, %v1358
    %v1360 = vshrl.u32 683565275, %v1359
    %v1361 = vshll.u32 683565275, %v1358
    %v1362 = vshrl.u32 2475754826, %v1359
    %v1363 = vor.u32 %v1361, %v1362
    %v1364 = vshll.u32 2475754826, %v1358
    %v1365 = vshrl.u32 2131351028, %v1359
    %v1366 = vor.u32 %v1364, %v1365
    %v1367 = vshll.u32 2131351028, %v1358
    %v1368 = vshrl.u32 2102212464, %v1359
    %v1369 = vor.u32 %v1367, %v1368
    %v1370 = vshll.u32 2102212464, %v1358
    %v1371 = vshrl.u32 920167782, %v1359
    %v1372 = vor.u32 %v1370, %v1371
    %v1373 = vshll.u32 920167782, %v1358
    %v1374 = vshrl.u32 1326507024, %v1359
    %v1375 = vor.u32 %v1373, %v1374
    %vm1376 = vcmp.lt.s32.totalorder %v1357, 1
    %vm1377 = vcmp.lt.s32.totalorder %v1357, 2
    %vm1378 = vcmp.lt.s32.totalorder %v1357, 3
    %vm1379 = vcmp.lt.s32.totalorder %v1357, 4
    %v1380 = vsel %vm1376, %v1360, %v1363
    %v1381 = vsel %vm1379, %v1369, 2102212464
    %v1382 = vsel %vm1378, %v1366, %v1381
    %v1383 = vsel %vm1377, %v1380, %v1382
    %v1384 = vsel %vm1376, %v1363, %v1366
    %v1385 = vsel %vm1379, %v1372, 920167782
    %v1386 = vsel %vm1378, %v1369, %v1385
    %v1387 = vsel %vm1377, %v1384, %v1386
    %v1388 = vsel %vm1376, %v1366, %v1369
    %v1389 = vsel %vm1379, %v1375, 1326507024
    %v1390 = vsel %vm1378, %v1372, %v1389
    %v1391 = vsel %vm1377, %v1388, %v1390
    %v1392 = vshll.u32 %v1352, 8
    %v1393 = vand.u32 %v1392, 65535
    %v1394 = vshrl.u32 %v1392, 16
    %v1395 = vand.u32 %v1391, 65535
    %v1396 = vshrl.u32 %v1391, 16
    %v1397 = vmul.u32 %v1393, %v1395
    %v1398 = vmul.u32 %v1393, %v1396
    %v1399 = vmul.u32 %v1394, %v1395
    %v1400 = vmul.u32 %v1394, %v1396
    %v1401 = vshll.u32 %v1398, 16
    %v1402 = vshrl.u32 %v1398, 16
    %v1403 = vshll.u32 %v1399, 16
    %v1404 = vshrl.u32 %v1399, 16
    %vm1405 = vc.u32 %v1397, %v1401
    %v1406 = vsel %vm1405, 1, 0
    %v1407 = vadd.s32 %v1397, %v1401
    %v1408 = vadd.s32 %v1400, %v1406
    %vm1409 = vc.u32 %v1407, %v1403
    %v1410 = vsel %vm1409, 1, 0
    %v1411 = vadd.s32 %v1407, %v1403
    %v1412 = vadd.s32 %v1408, %v1410
    %v1413 = vadd.s32 %v1412, %v1402
    %v1414 = vadd.s32 %v1413, %v1404
    %v1415 = vand.u32 %v1392, 65535
    %v1416 = vshrl.u32 %v1392, 16
    %v1417 = vand.u32 %v1387, 65535
    %v1418 = vshrl.u32 %v1387, 16
    %v1419 = vmul.u32 %v1415, %v1417
    %v1420 = vmul.u32 %v1415, %v1418
    %v1421 = vmul.u32 %v1416, %v1417
    %v1422 = vmul.u32 %v1416, %v1418
    %v1423 = vshll.u32 %v1420, 16
    %v1424 = vshrl.u32 %v1420, 16
    %v1425 = vshll.u32 %v1421, 16
    %v1426 = vshrl.u32 %v1421, 16
    %vm1427 = vc.u32 %v1419, %v1423
    %v1428 = vsel %vm1427, 1, 0
    %v1429 = vadd.s32 %v1419, %v1423
    %v1430 = vadd.s32 %v1422, %v1428
    %vm1431 = vc.u32 %v1429, %v1425
    %v1432 = vsel %vm1431, 1, 0
    %v1433 = vadd.s32 %v1429, %v1425
    %v1434 = vadd.s32 %v1430, %v1432
    %v1435 = vadd.s32 %v1434, %v1424
    %v1436 = vadd.s32 %v1435, %v1426
    %v1437 = vmul.u32 %v1392, %v1383
    %v1438 = vadd.s32 %v1414, %v1433
    %vm1439 = vc.u32 %v1414, %v1433
    %v1440 = vadd.s32 %v1436, 1
    %v1441 = vsel %vm1439, %v1440, %v1436
    %v1442 = vadd.s32 %v1437, %v1441
    %v1443 = vadd.s32 %v1442, 536870912
    %v1444 = vshrl.u32 %v1443, 30
    %v1445 = vshll.u32 %v1444, 30
    %v1446 = vsub.s32 %v1442, %v1445
    %vm1447 = vcmp.lt.s32.totalorder %v1446, 0
    %v1448 = vsub.s32 0, %v1446
    %v1449 = vsel %vm1447, %v1448, %v1446
    %v1450 = vclz %v1449
    %v1451 = vsub.s32 %v1450, 2
    %vm1452 = vcmp.gt.s32.totalorder 0, %v1451
    %v1453 = vsel %vm1452, 0, %v1451
    %v1454 = vsub.s32 32, %v1453
    %v1455 = vshll.u32 %v1446, %v1453
    %v1456 = vshrl.u32 %v1438, %v1454
    %v1457 = vor.u32 %v1455, %v1456
    %v1458 = vsub.s32 4294967266, %v1453
    %v1459 = vadd.s32 %v1458, 127
    %v1460 = vshll.u32 %v1459, 23
    %v1461 = vor.u32 4788187, %v1460
    %v1462 = vand.u32 2147483647, %v1461
    %v1464 = vcvt.s32.f32 %v1457
    %v1465 = vmul.f32 %v1464, %v1462
    %v1466 = vxor.u32 %v1465, 2147483648
    %v1467 = vsel %vm1346, %v1466, %v1465
    %v1468 = vsub.s32 4, %v1444
    %v1469 = vsel %vm1346, %v1468, %v1444
    %v1470 = vsel %vm1345, %v567, %v1467
    %v1471 = vsel %vm1345, 0, %v1469
    %v1472 = vmul.f32 %v1470, %v1470
    %v1473 = vmul.f32 %v1472, -0.001358992
    %v1474 = vadd.f32 %v1473, 0.041655596
    %v1475 = vmul.f32 %v1472, %v1474
    %v1476 = vadd.f32 %v1475, -0.4999988
    %v1477 = vmul.f32 %v1472, %v1476
    %v1478 = vadd.f32 1.0, %v1477
    %v1479 = vmul.f32 %v1470, %v1470
    %v1480 = vmul.f32 %v1479, -0.00019511016
    %v1481 = vadd.f32 %v1480, 0.008332121
    %v1482 = vmul.f32 %v1479, %v1481
    %v1483 = vadd.f32 %v1482, -0.16666654
    %v1484 = vmul.f32 %v1479, %v1483
    %v1485 = vadd.f32 %v1484, 1.0
    %v1486 = vmul.f32 %v1485, %v1470
    %vm1487 = vweird.f32 %v567
    %v1488 = vadd.s32 %v1471, 3
    %v1489 = vand.u32 %v1488, 3
    %vm1490 = vcmp.lt.s32.totalorder %v1489, 2
    %vm1491 = vcmp.eq.s32.totalorder %v1489, 0
    %v1492 = vxor.u32 %v1486, 2147483648
    %v1493 = vsel %vm1491, %v1478, %v1492
    %vm1494 = vcmp.eq.s32.totalorder %v1489, 2
    %v1495 = vxor.u32 %v1478, 2147483648
    %v1496 = vsel %vm1494, %v1495, %v1486
    %v1497 = vsel %vm1490, %v1493, %v1496
    %v1498 = vsel %vm1487, nan, %v1497
    %1499 = vst [vmem:[#allocation2] sm:$0xff] %v723
    %1500 = vst [vmem:[#allocation2 + $0x8] sm:$0xff] %v878
    %vm1501 = vcmask 850944
    %1502 = vst.msk [vmem:[#allocation2 + $0x10] sm:$0xff] %vm1501, %v1033
    %1503 = vst [vmem:[#allocation2 + $0x18] sm:$0xff] %v1188
    %1504 = vst [vmem:[#allocation2 + $0x20] sm:$0xff] %v1343
    %1505 = vst.msk [vmem:[#allocation2 + $0x28] sm:$0xff] %vm1501, %v1498
    // Predicated region
    $region10: #{tpu_custom_call.1} parent=1 // pred_check
      _
    $region11: #{tpu_custom_call.1} parent=1 // pred_check_branch
      %1507 = sbr.rel (0) target = $region13
    $region12: #{tpu_custom_call.1} parent=1 // pred_region
      %1509 = vsyncadd [#allocation3], 0
      %s1510 = sshll.u32 [#allocation2], 4
      %s1511 = int_to_ptr.vmem [resolvable:$true] %s1510
      %s1512 = sshll.u32 %s2, 4
      %s1513 = int_to_ptr.hbm [resolvable:$true] %s1512
      %1518 = dma.vmem_to_hbm [thread:$0]  %s1511, 768, %s1513, [#allocation3], 384, 384, 24
    $region13: #{tpu_custom_call.1} parent=1 // pred_fallthru
      _
    // Predicated region
    $region14: #{tpu_custom_call.1} parent=1 // pred_check
      _
    $region15: #{tpu_custom_call.1} parent=1 // pred_check_branch
      %1520 = sbr.rel (0) target = $region17
    $region16: #{tpu_custom_call.1} parent=1 // pred_region
      %1522 = dma.done [#allocation3], 768
    $region17: #{tpu_custom_call.1} parent=1 // pred_fallthru
      _
    %1523 = vsyncpa [#allocation3], 1

</llo_original>
